<compile_context>
chip_gen: v5e
topology: v5e:2x2
jax: 0.10.0
libtpu: 0.0.40
codegen_flags: <defaults>
</compile_context>

<pallas_src>
import jax
import jax.numpy as jnp
from jax.experimental import pallas as pl
from jax.experimental.pallas import tpu as pltpu


def _make_kernel(tile_n, d, valid_last, needs_mask):
    sub = tile_n // 8

    def fold(t):
        # Fold (tile_n, d) -> (8, d): pure VPU adds, lane-dense output store.
        return t.reshape(sub, 8, d).sum(axis=0)

    def kernel(preds_ref, target_ref, out_ref):
        mean = preds_ref[:, :d].astype(jnp.float32)
        raw = preds_ref[:, d:].astype(jnp.float32)
        tgt = target_ref[...].astype(jnp.float32)

        # Numerically stable softplus: log(1 + exp(x)) == logaddexp(x, 0).
        std = jnp.logaddexp(raw, 0.0)
        z = (tgt - mean) / std
        # 0.5*log(2*pi) constant is hoisted out of the kernel (added once in
        # the wrapper), so only data-dependent terms are computed here.
        term = jnp.log(std) + 0.5 * (z * z)

        if needs_mask:
            is_last = pl.program_id(0) == pl.num_programs(0) - 1

            @pl.when(jnp.logical_not(is_last))
            def _():
                out_ref[...] = fold(term)

            @pl.when(is_last)
            def _():
                # Rows >= valid_last are out-of-bounds garbage (no pad copy
                # was made): use a select (not multiply-by-mask) so NaN/Inf
                # computed from garbage cannot leak into the partial sums.
                row = jax.lax.broadcasted_iota(jnp.int32, (tile_n, 1), 0)
                out_ref[...] = fold(jnp.where(row < valid_last, term, 0.0))
        else:
            out_ref[...] = fold(term)

    return kernel


def _vmem_capacity_bytes():
    try:
        return int(pltpu.get_tpu_info().vmem_capacity_bytes)
    except Exception:
        return 64 * 1024 * 1024  # conservative (v7x per-TensorCore VMEM)


def _choose_tile_n(n, d, itemsize, vmem_cap):
    # Per-step input bytes = tile_n * (2*d preds + d target) * itemsize.
    # ~10 MiB/step on 128-MiB-VMEM chips (v5e/v6e), ~6 MiB on v7x (64 MiB/TC);
    # double-buffered inputs + f32 temporaries stay inside the explicit
    # vmem_limit_bytes requested below.
    if vmem_cap >= 100 * 1024 * 1024:
        budget = 10 * 1024 * 1024
    else:
        budget = 6 * 1024 * 1024
    row_bytes = 3 * d * itemsize
    t = budget // row_bytes
    t = max(8, min(16384, (t // 8) * 8))
    # Keep >= 2 grid steps whenever the batch allows it so v7x's two
    # TensorCores both get work ("parallel" axis); one extra pipeline step
    # (~0.35 us) elsewhere is negligible.
    if n >= 16:
        half = ((pl.cdiv(n, 2) + 7) // 8) * 8
        t = min(t, max(8, half))
    n8 = ((n + 7) // 8) * 8
    return min(t, n8)


def heteroscedastic_loss(preds, target, *, tile_n=None):
    """preds: [N, 2*D], target: [N, D]; returns scalar f32 loss."""
    assert preds.ndim == 2 and target.ndim == 2
    assert preds.shape[0] == target.shape[0]
    assert preds.shape[-1] % 2 == 0
    assert preds.shape[-1] // 2 == target.shape[-1]

    n, two_d = preds.shape
    d = two_d // 2
    itemsize = jnp.dtype(preds.dtype).itemsize
    tgt_itemsize = jnp.dtype(target.dtype).itemsize
    vmem_cap = _vmem_capacity_bytes()

    if tile_n is None:
        tile_n = _choose_tile_n(n, d, itemsize, vmem_cap)
    tile_n = max(8, (tile_n // 8) * 8)

    num_tiles = pl.cdiv(n, tile_n)
    needs_mask = (n % tile_n) != 0
    valid_last = n - (num_tiles - 1) * tile_n

    kernel = _make_kernel(tile_n, d, valid_last, needs_mask)

    preds_spec = pl.BlockSpec((tile_n, two_d), lambda i: (i, 0))
    tgt_spec = pl.BlockSpec((tile_n, d), lambda i: (i, 0))
    out_spec = pl.BlockSpec((8, d), lambda i: (i, 0))

    # Explicit scoped-VMEM request: double-buffered inputs/outputs plus a
    # generous allowance for the f32 elementwise temporaries.
    in_step = tile_n * 3 * d * itemsize
    out_step = 8 * d * 4
    vmem_need = 2 * (in_step + out_step) + 10 * tile_n * d * 4 + (6 << 20)
    vmem_limit = int(min(vmem_need, int(vmem_cap * 0.9)))

    cost = pl.CostEstimate(
        flops=10 * n * d,
        transcendentals=4 * n * d,
        bytes_accessed=(n * 2 * d * itemsize
                        + n * d * tgt_itemsize
                        + num_tiles * 8 * d * 4),
    )

    partials = pl.pallas_call(
        kernel,
        out_shape=jax.ShapeDtypeStruct((num_tiles * 8, d), jnp.float32),
        grid_spec=pltpu.PrefetchScalarGridSpec(
            num_scalar_prefetch=0,
            grid=(num_tiles,),
            in_specs=[preds_spec, tgt_spec],
            out_specs=out_spec,
        ),
        compiler_params=pltpu.CompilerParams(
            dimension_semantics=("parallel",),
            vmem_limit_bytes=vmem_limit,
        ),
        cost_estimate=cost,
    )(preds, target)

    count = jnp.float32(n * d)
    half_log_2pi = jnp.float32(0.5) * jnp.log(jnp.float32(2.0 * jnp.pi))
    return jnp.sum(partials) / count + half_log_2pi


def _reference_loss(preds, target):
    d = target.shape[-1]
    mean = preds[:, :d].astype(jnp.float32)
    std = jax.nn.softplus(preds[:, d:].astype(jnp.float32))
    z = (target.astype(jnp.float32) - mean) / std
    nll = 0.5 * jnp.log(2.0 * jnp.pi) + jnp.log(std) + 0.5 * z * z
    return jnp.mean(nll)


if __name__ == "__main__":
    key = jax.random.PRNGKey(0)
    k1, k2, k3, k4 = jax.random.split(key, 4)

    # 1) Lane-aligned D, ragged N, small explicit tile -> masked last tile,
    #    multi-step "parallel" grid, no pad copy.
    N1, D1 = 40, 128
    preds1 = jax.random.normal(k1, (N1, 2 * D1), dtype=jnp.float32)
    target1 = jax.random.normal(k2, (N1, D1), dtype=jnp.float32)
    loss1 = heteroscedastic_loss(preds1, target1, tile_n=16)
    jax.block_until_ready(loss1)
    ref1 = _reference_loss(preds1, target1)
    assert jnp.allclose(loss1, ref1, rtol=5e-3, atol=5e-3), (loss1, ref1)

    # 2) D not a multiple of 128 (in-kernel unaligned mean/raw split),
    #    N divisible by the tile -> unmasked fast path.
    N2, D2 = 16, 32
    preds2 = jax.random.normal(k3, (N2, 2 * D2), dtype=jnp.float32)
    target2 = jax.random.normal(k4, (N2, D2), dtype=jnp.float32)
    loss2 = heteroscedastic_loss(preds2, target2, tile_n=8)
    jax.block_until_ready(loss2)
    ref2 = _reference_loss(preds2, target2)
    assert jnp.allclose(loss2, ref2, rtol=5e-3, atol=5e-3), (loss2, ref2)

    # 3) Automatic (generation-aware) tile selection on the ragged case.
    loss3 = heteroscedastic_loss(preds1, target1)
    jax.block_until_ready(loss3)
    assert jnp.allclose(loss3, ref1, rtol=5e-3, atol=5e-3), (loss3, ref1)

    print("KERNEL_OK")
</pallas_src>

<mosaic_0001>
module attributes {stable_mosaic.version = 11 : i64} {
  func.func @kernel(%arg0: i32, %arg1: memref<16x256xf32, #tpu.memory_space<vmem>>, %arg2: memref<16x128xf32, #tpu.memory_space<vmem>>, %arg3: memref<8x128xf32, #tpu.memory_space<vmem>>) attributes {dimension_semantics = [#tpu.dimension_semantics<parallel>], iteration_bounds = array<i64: 3>, scalar_prefetch = 0 : i64, scratch_operands = 0 : i64, tpu.core_type = #tpu.core_type<tc>, window_params = [{transform_indices = @transform_0, window_bounds = array<i64: 16, 256>}, {transform_indices = @transform_1, window_bounds = array<i64: 16, 128>}, {transform_indices = @transform_2, window_bounds = array<i64: 8, 128>}]} {
    %c0 = arith.constant 0 : index
    %c0_0 = arith.constant 0 : index
    %0 = vector.load %arg1[%c0, %c0_0] : memref<16x256xf32, #tpu.memory_space<vmem>>, vector<16x128xf32>
    %c0_1 = arith.constant 0 : index
    %c128 = arith.constant 128 : index
    %1 = vector.load %arg1[%c0_1, %c128] : memref<16x256xf32, #tpu.memory_space<vmem>>, vector<16x128xf32>
    %c0_2 = arith.constant 0 : index
    %c0_3 = arith.constant 0 : index
    %2 = vector.load %arg2[%c0_2, %c0_3] : memref<16x128xf32, #tpu.memory_space<vmem>>, vector<16x128xf32>
    %cst = arith.constant 0.000000e+00 : f32
    %3 = vector.broadcast %cst : f32 to vector<16x128xf32>
    %4 = arith.maximumf %1, %3 : vector<16x128xf32>
    %5 = vector.broadcast %cst : f32 to vector<16x128xf32>
    %6 = arith.subf %1, %5 : vector<16x128xf32>
    %7 = arith.cmpf one, %6, %6 : vector<16x128xf32>
    %8 = vector.broadcast %cst : f32 to vector<16x128xf32>
    %9 = arith.addf %1, %8 : vector<16x128xf32>
    %10 = math.absf %6 : vector<16x128xf32>
    %cst_4 = arith.constant 0.000000e+00 : f32
    %11 = vector.broadcast %cst_4 : f32 to vector<16x128xf32>
    %12 = arith.subf %11, %10 : vector<16x128xf32>
    %13 = math.exp %12 : vector<16x128xf32>
    %14 = math.log1p %13 : vector<16x128xf32>
    %15 = arith.addf %4, %14 : vector<16x128xf32>
    %16 = arith.select %7, %9, %15 : vector<16x128xi1>, vector<16x128xf32>
    %17 = arith.subf %2, %0 : vector<16x128xf32>
    %18 = arith.divf %17, %16 : vector<16x128xf32>
    %19 = math.log %16 : vector<16x128xf32>
    %20 = arith.mulf %18, %18 : vector<16x128xf32>
    %cst_5 = arith.constant 5.000000e-01 : f32
    %21 = vector.broadcast %cst_5 : f32 to vector<16x128xf32>
    %22 = arith.mulf %21, %20 : vector<16x128xf32>
    %23 = arith.addf %19, %22 : vector<16x128xf32>
    %c2_i32 = arith.constant 2 : i32
    %24 = arith.cmpi eq, %arg0, %c2_i32 : i32
    %true = arith.constant true
    %25 = arith.xori %24, %true : i1
    %26 = arith.extui %25 : i1 to i32
    %c0_i32 = arith.constant 0 : i32
    %27 = arith.cmpi ne, %26, %c0_i32 : i32
    scf.if %27 {
      %30 = vector.shape_cast %23 : vector<16x128xf32> to vector<2x8x128xf32>
      %cst_7 = arith.constant dense<0.000000e+00> : vector<8x128xf32>
      %31 = vector.multi_reduction <add>, %30, %cst_7 [0] : vector<2x8x128xf32> to vector<8x128xf32>
      %c0_8 = arith.constant 0 : index
      %c0_9 = arith.constant 0 : index
      %32 = vector.load %arg3[%c0_8, %c0_9] : memref<8x128xf32, #tpu.memory_space<vmem>>, vector<8x128xf32>
      tpu.vector_store %arg3[%c0_8, %c0_9], %31 {strides = array<i32>} : memref<8x128xf32, #tpu.memory_space<vmem>>, vector<8x128xf32>,
    } else {
    }
    %28 = arith.extui %24 : i1 to i32
    %c0_i32_6 = arith.constant 0 : i32
    %29 = arith.cmpi ne, %28, %c0_i32_6 : i32
    scf.if %29 {
      %30 = tpu.iota {dimensions = array<i32: 0>} : vector<16x1xi32>
      %c8_i32 = arith.constant 8 : i32
      %31 = vector.broadcast %c8_i32 : i32 to vector<16x1xi32>
      %32 = arith.cmpi slt, %30, %31 : vector<16x1xi32>
      %cst_7 = arith.constant 0.000000e+00 : f32
      %33 = vector.shape_cast %32 : vector<16x1xi1> to vector<16x1xi1>
      %34 = vector.broadcast %33 : vector<16x1xi1> to vector<16x128xi1>
      %35 = vector.broadcast %cst_7 : f32 to vector<16x128xf32>
      %36 = arith.select %34, %23, %35 : vector<16x128xi1>, vector<16x128xf32>
      %37 = vector.shape_cast %36 : vector<16x128xf32> to vector<2x8x128xf32>
      %cst_8 = arith.constant dense<0.000000e+00> : vector<8x128xf32>
      %38 = vector.multi_reduction <add>, %37, %cst_8 [0] : vector<2x8x128xf32> to vector<8x128xf32>
      %c0_9 = arith.constant 0 : index
      %c0_10 = arith.constant 0 : index
      %39 = vector.load %arg3[%c0_9, %c0_10] : memref<8x128xf32, #tpu.memory_space<vmem>>, vector<8x128xf32>
      tpu.vector_store %arg3[%c0_9, %c0_10], %38 {strides = array<i32>} : memref<8x128xf32, #tpu.memory_space<vmem>>, vector<8x128xf32>,
    } else {
    }
    return
  }
  func.func @transform_0(%arg0: i32) -> (i32, i32) {
    %c0_i32 = arith.constant 0 : i32
    %c0_i32_0 = arith.constant 0 : i32
    return %arg0, %c0_i32 : i32, i32
  }
  func.func @transform_1(%arg0: i32) -> (i32, i32) {
    %c0_i32 = arith.constant 0 : i32
    %c0_i32_0 = arith.constant 0 : i32
    return %arg0, %c0_i32 : i32, i32
  }
  func.func @transform_2(%arg0: i32) -> (i32, i32) {
    %c0_i32 = arith.constant 0 : i32
    %c0_i32_0 = arith.constant 0 : i32
    return %arg0, %c0_i32 : i32, i32
  }
}

</mosaic_0001>

<llo_original>
// kernel: tpu_custom_call.1
$region0: #{tpu_custom_call.1}
  #allocation0 [shape = 'u32[]', space=smem, size = 0x4, offset = 0x4, fixed_abs, tag = 'smem constant byte address 0x4 - core index']
  #allocation1 [shape = 'u32[72,128]{1,0:T(1,128)}', space=vmem, size = 0x9000, scoped, tag = 'internal scratch']
  %s0 = inlined_call_operand.hbm [shape: f32[40,256], index: 0, kind: input, shape index: {}]
  %s1 = inlined_call_operand.hbm [shape: f32[40,128], index: 1, kind: input, shape index: {}]
  %s2 = inlined_call_operand.hbm [shape: f32[24,128], index: 2, kind: output, shape index: {}]
  %s3 = sld [smem:[#allocation0]]
  $region57: #{tpu_custom_call.1} parent=0
    _
  %s5 = ssub.s32 1, %s3
  %s6 = scalar_select 0, %s5, %s3
  $region1: #{tpu_custom_call.1} parent=0
    #allocation2 [shape = 'u8[32768]{0}', space=vmem, size = 0x8000, scoped, tag = 'input window, operand 0']
    #allocation3 [shape = 's32[2]{0}', space=sflag, size = 0x8, scoped, tag = 'scoped memory for tpu_custom_call.1']
    #allocation4 [shape = 's32[2]{0}', space=sflag, size = 0x8, scoped, tag = 'scoped memory for tpu_custom_call.1']
    #allocation5 [shape = 'u8[16384]{0}', space=vmem, size = 0x4000, scoped, tag = 'input window, operand 1']
    #allocation6 [shape = 's32[2]{0}', space=sflag, size = 0x8, scoped, tag = 'scoped memory for tpu_custom_call.1']
    #allocation7 [shape = 'u8[8192]{0}', space=vmem, size = 0x2000, scoped, tag = 'output window, operand 0']
    %7 = vsyncpa [#allocation3], 0
    %s8 = scalar_lea.sflag [#allocation3], 1
    %9 = vsyncpa %s8, 0
    %10 = vsyncpa [#allocation6], 0
    %s11 = scalar_lea.sflag [#allocation6], 1
    %12 = vsyncpa %s11, 0
    %13 = vsyncpa [#allocation4], 0
    %s14 = scalar_lea.sflag [#allocation4], 1
    %15 = vsyncpa %s14, 0
    loop: start=0, step=1, limit=5
    $region2: #{tpu_custom_call.1} parent=1 // loop_pre_header
      _
    $region3: #{tpu_custom_call.1} parent=1 // loop_header
      %s17 = sphi 0, %s21
      %p18 = scmp.ge.s32.totalorder %s17, 5
      %s27 = sphi 0, %s29
      %s30 = sphi 0, %s27
      %s31 = sphi 0, %s30
      %s47 = sphi 0, %s31
      %s53 = sphi 0, %s55
      %s56 = sphi 0, %s53
      %s57 = sphi 0, %s56
      %s73 = sphi 0, %s57
      %s79 = sphi 0, %s81
      %s82 = sphi 0, %s79
      %s83 = sphi 0, %s82
      %s99 = sphi 0, %s83
    $region4: #{tpu_custom_call.1} parent=1 // loop_header_branch
      %20 = sbr.rel (%p18) target = $region8
    $region5: #{tpu_custom_call.1} parent=1 // loop_body
      %s22 = ssub.s32 %s17, 1
      %s23 = ssub.s32 %s17, 2
      %s24 = sadd.s32 %s17, 1
      %s25 = ssub.s32 %s17, %s24
      %p26 = scmp.eq.s32.totalorder %s25, 0
      %s28 = sadd.s32 %s27, 1
      %s29 = scalar_select %p26, %s27, %s28
      %p32 = pneg %p26
      %p33 = scmp.eq.s32.totalorder %s17, 2
      %p34 = por %p32, %p33
      %p35 = scmp.ne.s32.totalorder %s27, %s30
      %p36 = scmp.eq.s32.totalorder %s17, 0
      %p37 = por %p35, %p36
      %p38 = scmp.ne.s32.totalorder %s27, %s30
      %p39 = scmp.eq.s32.totalorder %s22, 2
      %p40 = por %p38, %p39
      %p41 = scmp.ne.s32.totalorder %s30, %s31
      %p42 = scmp.eq.s32.totalorder %s22, 0
      %p43 = por %p41, %p42
      %p44 = scmp.ne.s32.totalorder %s30, %s31
      %p45 = scmp.eq.s32.totalorder %s23, 2
      %p46 = por %p44, %p45
      %p48 = scmp.ne.s32.totalorder %s31, %s47
      %p49 = scmp.eq.s32.totalorder %s23, 0
      %p50 = por %p48, %p49
      %s51 = ssub.s32 %s17, %s24
      %p52 = scmp.eq.s32.totalorder %s51, 0
      %s54 = sadd.s32 %s53, 1
      %s55 = scalar_select %p52, %s53, %s54
      %p58 = pneg %p52
      %p59 = scmp.eq.s32.totalorder %s17, 2
      %p60 = por %p58, %p59
      %p61 = scmp.ne.s32.totalorder %s53, %s56
      %p62 = scmp.eq.s32.totalorder %s17, 0
      %p63 = por %p61, %p62
      %p64 = scmp.ne.s32.totalorder %s53, %s56
      %p65 = scmp.eq.s32.totalorder %s22, 2
      %p66 = por %p64, %p65
      %p67 = scmp.ne.s32.totalorder %s56, %s57
      %p68 = scmp.eq.s32.totalorder %s22, 0
      %p69 = por %p67, %p68
      %p70 = scmp.ne.s32.totalorder %s56, %s57
      %p71 = scmp.eq.s32.totalorder %s23, 2
      %p72 = por %p70, %p71
      %p74 = scmp.ne.s32.totalorder %s57, %s73
      %p75 = scmp.eq.s32.totalorder %s23, 0
      %p76 = por %p74, %p75
      %s77 = ssub.s32 %s17, %s24
      %p78 = scmp.eq.s32.totalorder %s77, 0
      %s80 = sadd.s32 %s79, 1
      %s81 = scalar_select %p78, %s79, %s80
      %p84 = pneg %p78
      %p85 = scmp.eq.s32.totalorder %s17, 2
      %p86 = por %p84, %p85
      %p87 = scmp.ne.s32.totalorder %s79, %s82
      %p88 = scmp.eq.s32.totalorder %s17, 0
      %p89 = por %p87, %p88
      %p90 = scmp.ne.s32.totalorder %s79, %s82
      %p91 = scmp.eq.s32.totalorder %s22, 2
      %p92 = por %p90, %p91
      %p93 = scmp.ne.s32.totalorder %s82, %s83
      %p94 = scmp.eq.s32.totalorder %s22, 0
      %p95 = por %p93, %p94
      %p96 = scmp.ne.s32.totalorder %s82, %s83
      %p97 = scmp.eq.s32.totalorder %s23, 2
      %p98 = por %p96, %p97
      %p100 = scmp.ne.s32.totalorder %s83, %s99
      %p101 = scmp.eq.s32.totalorder %s23, 0
      %p102 = por %p100, %p101
      %p103 = scmp.le.s32.totalorder 1, %s17
      %p104 = scmp.lt.s32.totalorder %s17, 4
      %p105 = pnand %p103, %p104
      %p106 = pneg %p105
      // Predicated region
      $region9: #{tpu_custom_call.1} parent=5 // pred_check
        _
      $region10: #{tpu_custom_call.1} parent=5 // pred_check_branch
        %108 = sbr.rel (%p105) target = $region12
      $region11: #{tpu_custom_call.1} parent=5 // pred_region
        %s109 = ssub.s32 %s17, 1
      $region12: #{tpu_custom_call.1} parent=5 // pred_fallthru
        _
      %p110 = scmp.lt.s32.totalorder %s17, 3
      // Predicated region
      $region13: #{tpu_custom_call.1} parent=5 // pred_check
        %p111 = pneg %p110
      $region14: #{tpu_custom_call.1} parent=5 // pred_check_branch
        %113 = sbr.rel (%p111) target = $region16
      $region15: #{tpu_custom_call.1} parent=5 // pred_region
        // Predicated region
        $region17: #{tpu_custom_call.1} parent=15 // pred_check
          %p114 = pneg %p37
        $region18: #{tpu_custom_call.1} parent=15 // pred_check_branch
          %116 = sbr.rel (%p114) target = $region20
        $region19: #{tpu_custom_call.1} parent=15 // pred_region
          %s117 = sand.u32 %s27, 1
          %s118 = scalar_lea.sflag [#allocation3], %s117
          %s119 = sand.u32 %s27, 1
          %s120 = smul.addr %s119, 32
          %s121 = scalar_lea.vmem [#allocation2], %s120
          %s122 = smul.u32 2, %s17
          %s123 = ssub.s32 5, %s122
          %p124 = scmp.lt.s32.totalorder %s123, 2
          %s125 = scalar_select %p124, %s123, 2
          %s126 = smul.u32 8, %s125
          %s127 = smul.u32 %s126, 2
          %s128 = ssub.s32 32, %s127
          %s129 = sshll.u32 %s128, 4
          %130 = vsyncadd %s118, %s129
          %p131 = scmp.ne.s32.totalorder 0, %s127
          %s132 = smul.addr %s122, 2
          %s133 = smul.addr %s132, 8
          %s134 = scalar_lea.hbm %s0, %s133
          %s135 = smul.u32 16, %s125
          %s136 = sshll.u32 %s134, 4
          %s137 = int_to_ptr.hbm [resolvable:$true] %s136
          %s138 = sshll.u32 %s121, 4
          %s139 = int_to_ptr.vmem [resolvable:$true] %s138
          %s140 = sshll.u32 %s135, 4
          %144 = dma.hbm_to_vmem [thread:$0]  (%p131), %s137, %s140, %s139, %s118, 256, 256, 16
        $region20: #{tpu_custom_call.1} parent=15 // pred_fallthru
          _
        // Predicated region
        $region21: #{tpu_custom_call.1} parent=15 // pred_check
          %p145 = pneg %p63
        $region22: #{tpu_custom_call.1} parent=15 // pred_check_branch
          %147 = sbr.rel (%p145) target = $region24
        $region23: #{tpu_custom_call.1} parent=15 // pred_region
          %s148 = sand.u32 %s53, 1
          %s149 = scalar_lea.sflag [#allocation6], %s148
          %s150 = sand.u32 %s53, 1
          %s151 = smul.addr %s150, 16
          %s152 = scalar_lea.vmem [#allocation5], %s151
          %s153 = smul.u32 2, %s17
          %s154 = ssub.s32 5, %s153
          %p155 = scmp.lt.s32.totalorder %s154, 2
          %s156 = scalar_select %p155, %s154, 2
          %s157 = smul.u32 8, %s156
          %s158 = ssub.s32 16, %s157
          %s159 = sshll.u32 %s158, 4
          %160 = vsyncadd %s149, %s159
          %p161 = scmp.ne.s32.totalorder 0, %s157
          %s162 = smul.addr %s153, 8
          %s163 = scalar_lea.hbm %s1, %s162
          %s164 = smul.u32 8, %s156
          %s165 = sshll.u32 %s163, 4
          %s166 = int_to_ptr.hbm [resolvable:$true] %s165
          %s167 = sshll.u32 %s152, 4
          %s168 = int_to_ptr.vmem [resolvable:$true] %s167
          %s169 = sshll.u32 %s164, 4
          %173 = dma.hbm_to_vmem [thread:$0]  (%p161), %s166, %s169, %s168, %s149, 128, 128, 8
        $region24: #{tpu_custom_call.1} parent=15 // pred_fallthru
          _
      $region16: #{tpu_custom_call.1} parent=5 // pred_fallthru
        _
      %p174 = scmp.le.s32.totalorder 1, %s17
      %p175 = scmp.lt.s32.totalorder %s17, 4
      %p176 = pnand %p174, %p175
      %p177 = pneg %p176
      // Predicated region
      $region25: #{tpu_custom_call.1} parent=5 // pred_check
        _
      $region26: #{tpu_custom_call.1} parent=5 // pred_check_branch
        %179 = sbr.rel (%p176) target = $region28
      $region27: #{tpu_custom_call.1} parent=5 // pred_region
        %s180 = ssub.s32 %s17, 1
        %s181 = sand.u32 %s30, 1
        %s182 = scalar_lea.sflag [#allocation3], %s181
        %s183 = sand.u32 %s30, 1
        %s184 = smul.addr %s183, 32
        %s185 = scalar_lea.vmem [#allocation2], %s184
        // Predicated region
        $region29: #{tpu_custom_call.1} parent=27 // pred_check
          %p186 = pneg %p43
        $region30: #{tpu_custom_call.1} parent=27 // pred_check_branch
          %188 = sbr.rel (%p186) target = $region32
        $region31: #{tpu_custom_call.1} parent=27 // pred_region
          %190 = dma.done %s182, 512
        $region32: #{tpu_custom_call.1} parent=27 // pred_fallthru
          _
        %s191 = sand.u32 %s56, 1
        %s192 = scalar_lea.sflag [#allocation6], %s191
        %s193 = sand.u32 %s56, 1
        %s194 = smul.addr %s193, 16
        %s195 = scalar_lea.vmem [#allocation5], %s194
        // Predicated region
        $region33: #{tpu_custom_call.1} parent=27 // pred_check
          %p196 = pneg %p69
        $region34: #{tpu_custom_call.1} parent=27 // pred_check_branch
          %198 = sbr.rel (%p196) target = $region36
        $region35: #{tpu_custom_call.1} parent=27 // pred_region
          %200 = dma.done %s192, 256
        $region36: #{tpu_custom_call.1} parent=27 // pred_fallthru
          _
        %s201 = sand.u32 %s30, 1
        %s202 = scalar_lea.sflag [#allocation3], %s201
        %s203 = sand.u32 %s30, 1
        %s204 = smul.addr %s203, 32
        %s205 = scalar_lea.vmem [#allocation2], %s204
        %p206 = pneg %p43
        %p207 = pneg %p40
        %s208 = sand.u32 %s56, 1
        %s209 = scalar_lea.sflag [#allocation6], %s208
        %s210 = sand.u32 %s56, 1
        %s211 = smul.addr %s210, 16
        %s212 = scalar_lea.vmem [#allocation5], %s211
        %p213 = pneg %p69
        %p214 = pneg %p66
        %p215 = pneg %p95
        %p216 = pneg %p92
        %s217 = sand.u32 %s82, 1
        %s218 = scalar_lea.sflag [#allocation4], %s217
        %s219 = sand.u32 %s82, 1
        %s220 = smul.addr %s219, 8
        %s221 = scalar_lea.vmem [#allocation7], %s220
        %s222 = smul.u32 2, %s22
        %s223 = ssub.s32 5, %s222
        %p224 = scmp.lt.s32.totalorder %s223, 2
        %s225 = scalar_select %p224, %s223, 2
        %s226 = smul.u32 8, %s225
        %s227 = smul.u32 %s226, 2
        %s228 = smul.u32 2, %s22
        %s229 = ssub.s32 5, %s228
        %p230 = scmp.lt.s32.totalorder %s229, 2
        %s231 = scalar_select %p230, %s229, 2
        %s232 = smul.u32 8, %s231
        %v233 = vld [vmem:[%s185] sm:$0xff]
        %v234 = vld [vmem:[%s185 + $0x10] sm:$0xff]
        %v235 = vld [vmem:[%s185 + $0x8] sm:$0xff]
        %v236 = vld [vmem:[%s185 + $0x18] sm:$0xff]
        %v237 = vld [vmem:[%s195] sm:$0xff]
        %v238 = vld [vmem:[%s195 + $0x8] sm:$0xff]
        %v239 = vmax.f32 %v235, 0.0
        %v240 = vmax.f32 %v236, 0.0
        %vm241 = vcmp.ne.f32.partialorder %v235, %v235
        %vm242 = vcmp.ne.f32.partialorder %v236, %v236
        %v243 = vadd.f32 %v235, 0.0
        %v244 = vadd.f32 %v236, 0.0
        %v245 = vand.u32 2147483647, %v235
        %v246 = vand.u32 2147483647, %v236
        %v247 = vsub.f32 0.0, %v245
        %v248 = vsub.f32 0.0, %v246
        %v249 = vmul.f32 %v247, 1.442695
        %v250 = vpow.pop %v249
        %v251 = vmul.f32 %v248, 1.442695
        %v252 = vpow.pop %v251
        %v253 = vadd.f32 %v250, 1.0
        %v254 = vlog2.pop %v253
        %v255 = vmul.f32 %v254, 0.6931472
        %v256 = vmul.f32 -0.5, %v250
        %v257 = vadd.f32 %v256, 1.0
        %v258 = vmul.f32 %v257, %v250
        %v259 = vand.u32 2147483647, %v250
        %vm260 = vcmp.lt.f32.partialorder %v259, 0.0004427343
        %v261 = vsel %vm260, %v258, %v255
        %v262 = vadd.f32 %v252, 1.0
        %v263 = vlog2.pop %v262
        %v264 = vmul.f32 %v263, 0.6931472
        %v265 = vmul.f32 -0.5, %v252
        %v266 = vadd.f32 %v265, 1.0
        %v267 = vmul.f32 %v266, %v252
        %v268 = vand.u32 2147483647, %v252
        %vm269 = vcmp.lt.f32.partialorder %v268, 0.0004427343
        %v270 = vsel %vm269, %v267, %v264
        %v271 = vadd.f32 %v239, %v261
        %v272 = vadd.f32 %v240, %v270
        %v273 = vsel %vm241, %v243, %v271
        %v274 = vsel %vm242, %v244, %v272
        %v275 = vsub.f32 %v237, %v233
        %v276 = vsub.f32 %v238, %v234
        %v277 = vrcp.pop %v273
        %v278 = vmul.f32 %v273, %v277
        %v279 = vsub.f32 1.0, %v278
        %v280 = vmul.f32 %v277, %v279
        %v281 = vadd.f32 %v277, %v280
        %vm282 = vweird.f32 %v273
        %vm283 = vweird.f32 %v277
        %vm284 = vmor %vm282, %vm283
        %v285 = vsel %vm284, %v277, %v281
        %v286 = vand.u32 2147483647, %v273
        %vm287 = vcmp.eq.f32.partialorder %v286, 8.507059e+37
        %v288 = vand.u32 %v273, 2147483648
        %v289 = vor.u32 1.1754944e-38, %v288
        %v290 = vsel %vm287, %v289, %v285
        %v291 = vmul.f32 %v275, %v290
        %v292 = vrcp.pop %v274
        %v293 = vmul.f32 %v274, %v292
        %v294 = vsub.f32 1.0, %v293
        %v295 = vmul.f32 %v292, %v294
        %v296 = vadd.f32 %v292, %v295
        %vm297 = vweird.f32 %v274
        %vm298 = vweird.f32 %v292
        %vm299 = vmor %vm297, %vm298
        %v300 = vsel %vm299, %v292, %v296
        %v301 = vand.u32 2147483647, %v274
        %vm302 = vcmp.eq.f32.partialorder %v301, 8.507059e+37
        %v303 = vand.u32 %v274, 2147483648
        %v304 = vor.u32 1.1754944e-38, %v303
        %v305 = vsel %vm302, %v304, %v300
        %v306 = vmul.f32 %v276, %v305
        %v307 = vlog2.pop %v273
        %v308 = vmul.f32 %v307, 0.6931472
        %v309 = vlog2.pop %v274
        %v310 = vmul.f32 %v309, 0.6931472
        %v311 = vmul.f32 %v291, %v291
        %v312 = vmul.f32 %v306, %v306
        %v313 = vmul.f32 %v311, 0.5
        %v314 = vmul.f32 %v312, 0.5
        %v315 = vadd.f32 %v308, %v313
        %v316 = vadd.f32 %v310, %v314
        %p317 = scmp.eq.s32.totalorder %s22, 2
        %p318 = scmp.ne.s32.totalorder %s22, 2
        // Predicated region
        $region37: #{tpu_custom_call.1} parent=27 // pred_check
          %p319 = pneg %p318
        $region38: #{tpu_custom_call.1} parent=27 // pred_check_branch
          %321 = sbr.rel (%p319) target = $region40
        $region39: #{tpu_custom_call.1} parent=27 // pred_region
          %v322 = vadd.f32 %v315, %v316
          %323 = vst [vmem:[%s221] sm:$0xff] %v322
        $region40: #{tpu_custom_call.1} parent=27 // pred_fallthru
          _
        // Predicated region
        $region41: #{tpu_custom_call.1} parent=27 // pred_check
          %p324 = pneg %p317
        $region42: #{tpu_custom_call.1} parent=27 // pred_check_branch
          %326 = sbr.rel (%p324) target = $region44
        $region43: #{tpu_custom_call.1} parent=27 // pred_region
          %v327 = vlaneseq
          %v328 = vshrl.u32 %v327, 7
          %v329 = vadd.s32 %v328, 8
          %vm330 = vcmp.lt.s32.totalorder %v328, 8
          %vm331 = vcmp.lt.s32.totalorder %v329, 8
          %v332 = vsel %vm330, 1, 0
          %v333 = vsel %vm331, 1, 0
          %vm334 = vcmp.eq.s32.totalorder %v332, 1
          %vm335 = vcmp.eq.s32.totalorder %v333, 1
          %v336 = vsel %vm334, %v315, 0.0
          %v337 = vsel %vm335, %v316, 0.0
          %v338 = vadd.f32 %v336, %v337
          %339 = vst [vmem:[%s221] sm:$0xff] %v338
        $region44: #{tpu_custom_call.1} parent=27 // pred_fallthru
          _
        %s340 = sand.u32 %s82, 1
        %s341 = scalar_lea.sflag [#allocation4], %s340
        %s342 = sand.u32 %s82, 1
        %s343 = smul.addr %s342, 8
        %s344 = scalar_lea.vmem [#allocation7], %s343
        // Predicated region
        $region45: #{tpu_custom_call.1} parent=27 // pred_check
          %p345 = pneg %p92
        $region46: #{tpu_custom_call.1} parent=27 // pred_check_branch
          %347 = sbr.rel (%p345) target = $region48
        $region47: #{tpu_custom_call.1} parent=27 // pred_region
          %349 = vsyncadd %s341, 0
          %s350 = smul.addr %s22, 8
          %s351 = scalar_lea.hbm %s2, %s350
          %s353 = sshll.u32 %s344, 4
          %s354 = int_to_ptr.vmem [resolvable:$true] %s353
          %s355 = sshll.u32 %s351, 4
          %s356 = int_to_ptr.hbm [resolvable:$true] %s355
          %358 = dma.vmem_to_hbm [thread:$0]  %s354, 128, %s356, %s341
        $region48: #{tpu_custom_call.1} parent=27 // pred_fallthru
          _
      $region28: #{tpu_custom_call.1} parent=5 // pred_fallthru
        _
      %p359 = scmp.le.s32.totalorder 2, %s17
      // Predicated region
      $region49: #{tpu_custom_call.1} parent=5 // pred_check
        %p360 = pneg %p359
      $region50: #{tpu_custom_call.1} parent=5 // pred_check_branch
        %362 = sbr.rel (%p360) target = $region52
      $region51: #{tpu_custom_call.1} parent=5 // pred_region
        %s363 = ssub.s32 %s17, 2
        // Predicated region
        $region53: #{tpu_custom_call.1} parent=51 // pred_check
          %p364 = pneg %p98
        $region54: #{tpu_custom_call.1} parent=51 // pred_check_branch
          %366 = sbr.rel (%p364) target = $region56
        $region55: #{tpu_custom_call.1} parent=51 // pred_region
          %s367 = sand.u32 %s83, 1
          %s368 = scalar_lea.sflag [#allocation4], %s367
          %s369 = sand.u32 %s83, 1
          %s370 = smul.addr %s369, 8
          %s371 = scalar_lea.vmem [#allocation7], %s370
          %373 = dma.done %s368, 128
        $region56: #{tpu_custom_call.1} parent=51 // pred_fallthru
          _
      $region52: #{tpu_custom_call.1} parent=5 // pred_fallthru
        _
    $region6: #{tpu_custom_call.1} parent=1 // loop_footer
      %s21 = sadd.s32 1, %s17
    $region7: #{tpu_custom_call.1} parent=1 // loop_footer_branch
      %16 = sbr.rel target = $region3
    $region8: #{tpu_custom_call.1} parent=1 // loop_exit
      _
    %374 = vsyncpa [#allocation3], 1
    %s375 = scalar_lea.sflag [#allocation3], 1
    %376 = vsyncpa %s375, 1
    %377 = vsyncpa [#allocation6], 1
    %s378 = scalar_lea.sflag [#allocation6], 1
    %379 = vsyncpa %s378, 1
    %380 = vsyncpa [#allocation4], 1
    %s381 = scalar_lea.sflag [#allocation4], 1
    %382 = vsyncpa %s381, 1

</llo_original>
